<compile_context>
chip_gen: v5e
topology: v5e:2x2
jax: 0.10.0
libtpu: 0.0.40
codegen_flags: <defaults>
</compile_context>

<pallas_src>
import functools

import jax
import jax.numpy as jnp
from jax.experimental import pallas as pl
from jax.experimental.pallas import tpu as pltpu


# sigmoid(_NEG_FILL) == 0.0 exactly in f32, so masked/padded lanes contribute
# nothing to any of the four partial sums (their lse is multiplied by 0).
_NEG_FILL = -1e30


def _dice_ce_partial_kernel(x_ref, y_ref, acc_ref, *, hw, tile, apply_mask):
    """Process one (C, T) tile of one batch element.

    acc_ref: (4, T) f32 output block for this batch element, VMEM-resident
    across the tile (reduction) axis.  Rows:
      0: sum_c sigmoid(x)
      1: sum_c sigmoid(y)
      2: sum_c sigmoid(x) * sigmoid(y)
      3: logsumexp_c(sigmoid(x)) * sum_c sigmoid(y)
    """
    t_idx = pl.program_id(1)

    @pl.when(t_idx == 0)
    def _():
        acc_ref[...] = jnp.zeros_like(acc_ref)

    x = x_ref[...].astype(jnp.float32)   # (C, T)
    y = y_ref[...].astype(jnp.float32)

    if apply_mask:
        # Last tile may extend past hw; replace out-of-range lanes with a huge
        # negative so sigmoid() maps them to exactly 0 (zero contribution).
        lane = jax.lax.broadcasted_iota(jnp.int32, x.shape, dimension=1)
        valid = (t_idx * tile + lane) < hw
        x = jnp.where(valid, x, _NEG_FILL)
        y = jnp.where(valid, y, _NEG_FILL)

    sx = jax.nn.sigmoid(x)               # values in (0, 1); masked lanes exactly 0
    sy = jax.nn.sigmoid(y)

    col_sx = jnp.sum(sx, axis=0, keepdims=True)        # (1, T)
    col_sy = jnp.sum(sy, axis=0, keepdims=True)        # (1, T)
    col_xy = jnp.sum(sx * sy, axis=0, keepdims=True)   # (1, T)

    # Softmax logits are sigmoid outputs bounded in (0, 1) -> exp() in (1, e),
    # so the usual max-subtraction is unnecessary (saves an XLU max + VPU sub).
    lse = jnp.log(jnp.sum(jnp.exp(sx), axis=0, keepdims=True))   # (1, T)
    ce_part = lse * col_sy                                       # (1, T)

    acc_ref[...] += jnp.concatenate([col_sx, col_sy, col_xy, ce_part], axis=0)


def dice_cross_entropy(x: jax.Array, y: jax.Array, *,
                       max_block_bytes: int = 512 * 1024,
                       tile_cap: int = 32768) -> jax.Array:
    """x, y: (N, C, H, W) float -> scalar float32 loss (dice + soft-target CE)."""
    assert x.shape == y.shape and x.ndim == 4
    n, c, h, w = x.shape
    hw = h * w
    n_positions = n * h * w   # CE mean divisor: N*H*W (host-side constant)

    # Free view: NCHW -> (N, C, HW).  No transpose, no extra HBM traffic.
    x3 = x.reshape(n, c, hw)
    y3 = y.reshape(n, c, hw)

    hw_p = hw
    if hw < 128:
        # Tiny spatial extent: pad to one full lane group (negligible cost).
        pad = ((0, 0), (0, 0), (0, 128 - hw))
        x3 = jnp.pad(x3, pad, constant_values=_NEG_FILL)
        y3 = jnp.pad(y3, pad, constant_values=_NEG_FILL)
        hw_p = 128

    # Lane-dense tile width: multiple of 128, sized to ~max_block_bytes per
    # input block (amortizes per-grid-step overhead when C is small), capped by
    # tile_cap and by the largest 128-multiple that fits inside hw_p.
    t = max_block_bytes // (c * 4)
    t = max(128, (t // 128) * 128)
    t = min(t, tile_cap, (hw_p // 128) * 128)
    num_tiles = -(-hw_p // t)
    apply_mask = (hw_p % t) != 0

    kernel = functools.partial(_dice_ce_partial_kernel,
                               hw=hw, tile=t, apply_mask=apply_mask)

    partials = pl.pallas_call(
        kernel,
        out_shape=jax.ShapeDtypeStruct((n, 4, t), jnp.float32),
        grid=(n, num_tiles),
        in_specs=[
            pl.BlockSpec((None, c, t), lambda i, j: (i, 0, j)),
            pl.BlockSpec((None, c, t), lambda i, j: (i, 0, j)),
        ],
        # Same output block across the tile axis -> VMEM-resident accumulator.
        out_specs=pl.BlockSpec((None, 4, t), lambda i, j: (i, 0, 0)),
        compiler_params=pltpu.CompilerParams(
            dimension_semantics=("parallel", "arbitrary"),
            vmem_limit_bytes=32 * 1024 * 1024,
        ),
    )(x3, y3)

    # Tiny final reduction + scalar combine in plain JAX.
    sums = jnp.sum(partials, axis=(0, 2))             # (4,)
    s_x, s_y, s_xy, ce_lse = sums[0], sums[1], sums[2], sums[3]
    dice = 1.0 - (2.0 * s_xy + 1.0) / (s_x + s_y + 1.0)
    # ce_sum = sum_m lse_m * (sum_c sy)_m - sum(sx * sy)
    ce = (ce_lse - s_xy) / jnp.float32(n_positions)
    return (dice + ce).astype(jnp.float32)


def _reference(x, y):
    # Pure-JAX reference of the PyTorch forward, for validation.
    sx = jax.nn.sigmoid(x.astype(jnp.float32))
    sy = jax.nn.sigmoid(y.astype(jnp.float32))
    dice = 1.0 - (2.0 * jnp.sum(sx * sy) + 1.0) / (jnp.sum(sx) + jnp.sum(sy) + 1.0)
    lsm = jax.nn.log_softmax(sx, axis=1)          # class dim = 1 (NCHW)
    ce = jnp.mean(-jnp.sum(sy * lsm, axis=1))     # mean over N, H, W
    return dice + ce


if __name__ == "__main__":
    key = jax.random.PRNGKey(0)
    kx, ky = jax.random.split(key)
    N, C, H, W = 2, 4, 16, 16
    x = jax.random.normal(kx, (N, C, H, W), dtype=jnp.float32)
    y = jax.random.normal(ky, (N, C, H, W), dtype=jnp.float32)

    loss_fn = jax.jit(dice_cross_entropy)
    loss = jax.block_until_ready(loss_fn(x, y))
    ref = jax.block_until_ready(_reference(x, y))

    assert jnp.allclose(loss, ref, rtol=1e-4, atol=1e-4), (loss, ref)
    print("KERNEL_OK")
</pallas_src>

<mosaic_0001>
module attributes {stable_mosaic.version = 11 : i64} {
  func.func @_dice_ce_partial_kernel(%arg0: i32, %arg1: i32, %arg2: memref<1x4x256xf32, #tpu.memory_space<vmem>>, %arg3: memref<1x4x256xf32, #tpu.memory_space<vmem>>, %arg4: memref<1x4x256xf32, #tpu.memory_space<vmem>>) attributes {dimension_semantics = [#tpu.dimension_semantics<parallel>, #tpu.dimension_semantics<arbitrary>], iteration_bounds = array<i64: 2, 1>, scalar_prefetch = 0 : i64, scratch_operands = 0 : i64, tpu.core_type = #tpu.core_type<tc>, window_params = [{transform_indices = @transform_0, window_bounds = array<i64: 1, 4, 256>}, {transform_indices = @transform_1, window_bounds = array<i64: 1, 4, 256>}, {transform_indices = @transform_2, window_bounds = array<i64: 1, 4, 256>}]} {
    %c0_i32 = arith.constant 0 : i32
    %0 = arith.cmpi eq, %arg1, %c0_i32 : i32
    %1 = arith.extui %0 : i1 to i32
    %c0_i32_0 = arith.constant 0 : i32
    %2 = arith.cmpi ne, %1, %c0_i32_0 : i32
    scf.if %2 {
      %cst_17 = arith.constant 0.000000e+00 : f32
      %36 = vector.broadcast %cst_17 : f32 to vector<4x256xf32>
      %c0_18 = arith.constant 0 : index
      %c0_19 = arith.constant 0 : index
      %c0_20 = arith.constant 0 : index
      %37 = vector.load %arg4[%c0_18, %c0_19, %c0_20] : memref<1x4x256xf32, #tpu.memory_space<vmem>>, vector<1x4x256xf32>
      %38 = vector.shape_cast %37 : vector<1x4x256xf32> to vector<4x256xf32>
      %39 = vector.shape_cast %36 : vector<4x256xf32> to vector<1x4x256xf32>
      tpu.vector_store %arg4[%c0_18, %c0_19, %c0_20], %39 {strides = array<i32>} : memref<1x4x256xf32, #tpu.memory_space<vmem>>, vector<1x4x256xf32>,
    } else {
    }
    %c0 = arith.constant 0 : index
    %c0_1 = arith.constant 0 : index
    %c0_2 = arith.constant 0 : index
    %3 = vector.load %arg2[%c0, %c0_1, %c0_2] : memref<1x4x256xf32, #tpu.memory_space<vmem>>, vector<1x4x256xf32>
    %4 = vector.shape_cast %3 : vector<1x4x256xf32> to vector<4x256xf32>
    %c0_3 = arith.constant 0 : index
    %c0_4 = arith.constant 0 : index
    %c0_5 = arith.constant 0 : index
    %5 = vector.load %arg3[%c0_3, %c0_4, %c0_5] : memref<1x4x256xf32, #tpu.memory_space<vmem>>, vector<1x4x256xf32>
    %6 = vector.shape_cast %5 : vector<1x4x256xf32> to vector<4x256xf32>
    %7 = arith.negf %4 : vector<4x256xf32>
    %8 = math.exp %7 : vector<4x256xf32>
    %cst = arith.constant 1.000000e+00 : f32
    %9 = vector.broadcast %cst : f32 to vector<4x256xf32>
    %10 = arith.addf %9, %8 : vector<4x256xf32>
    %11 = arith.divf %9, %10 : vector<4x256xf32>
    %12 = arith.negf %6 : vector<4x256xf32>
    %13 = math.exp %12 : vector<4x256xf32>
    %cst_6 = arith.constant 1.000000e+00 : f32
    %14 = vector.broadcast %cst_6 : f32 to vector<4x256xf32>
    %15 = arith.addf %14, %13 : vector<4x256xf32>
    %16 = arith.divf %14, %15 : vector<4x256xf32>
    %cst_7 = arith.constant dense<0.000000e+00> : vector<256xf32>
    %17 = vector.multi_reduction <add>, %11, %cst_7 [0] : vector<4x256xf32> to vector<256xf32>
    %18 = vector.shape_cast %17 : vector<256xf32> to vector<1x256xf32>
    %cst_8 = arith.constant dense<0.000000e+00> : vector<256xf32>
    %19 = vector.multi_reduction <add>, %16, %cst_8 [0] : vector<4x256xf32> to vector<256xf32>
    %20 = vector.shape_cast %19 : vector<256xf32> to vector<1x256xf32>
    %21 = arith.mulf %11, %16 : vector<4x256xf32>
    %cst_9 = arith.constant dense<0.000000e+00> : vector<256xf32>
    %22 = vector.multi_reduction <add>, %21, %cst_9 [0] : vector<4x256xf32> to vector<256xf32>
    %23 = vector.shape_cast %22 : vector<256xf32> to vector<1x256xf32>
    %24 = math.exp %11 : vector<4x256xf32>
    %cst_10 = arith.constant dense<0.000000e+00> : vector<256xf32>
    %25 = vector.multi_reduction <add>, %24, %cst_10 [0] : vector<4x256xf32> to vector<256xf32>
    %26 = vector.shape_cast %25 : vector<256xf32> to vector<1x256xf32>
    %27 = math.log %26 : vector<1x256xf32>
    %28 = arith.mulf %27, %20 : vector<1x256xf32>
    %c0_11 = arith.constant 0 : index
    %c0_12 = arith.constant 0 : index
    %c0_13 = arith.constant 0 : index
    %29 = vector.load %arg4[%c0_11, %c0_12, %c0_13] : memref<1x4x256xf32, #tpu.memory_space<vmem>>, vector<1x4x256xf32>
    %30 = vector.shape_cast %29 : vector<1x4x256xf32> to vector<4x256xf32>
    %31 = tpu.concatenate %18, %20, %23, %28 in 0 : vector<1x256xf32>, vector<1x256xf32>, vector<1x256xf32>, vector<1x256xf32> -> vector<4x256xf32>
    %32 = arith.addf %30, %31 : vector<4x256xf32>
    %c0_14 = arith.constant 0 : index
    %c0_15 = arith.constant 0 : index
    %c0_16 = arith.constant 0 : index
    %33 = vector.load %arg4[%c0_14, %c0_15, %c0_16] : memref<1x4x256xf32, #tpu.memory_space<vmem>>, vector<1x4x256xf32>
    %34 = vector.shape_cast %33 : vector<1x4x256xf32> to vector<4x256xf32>
    %35 = vector.shape_cast %32 : vector<4x256xf32> to vector<1x4x256xf32>
    tpu.vector_store %arg4[%c0_14, %c0_15, %c0_16], %35 {strides = array<i32>} : memref<1x4x256xf32, #tpu.memory_space<vmem>>, vector<1x4x256xf32>,
    return
  }
  func.func @transform_0(%arg0: i32, %arg1: i32) -> (i32, i32, i32) {
    %c0_i32 = arith.constant 0 : i32
    %c0_i32_0 = arith.constant 0 : i32
    return %arg0, %c0_i32, %arg1 : i32, i32, i32
  }
  func.func @transform_1(%arg0: i32, %arg1: i32) -> (i32, i32, i32) {
    %c0_i32 = arith.constant 0 : i32
    %c0_i32_0 = arith.constant 0 : i32
    return %arg0, %c0_i32, %arg1 : i32, i32, i32
  }
  func.func @transform_2(%arg0: i32, %arg1: i32) -> (i32, i32, i32) {
    %c0_i32 = arith.constant 0 : i32
    %c0_i32_0 = arith.constant 0 : i32
    %c0_i32_1 = arith.constant 0 : i32
    return %arg0, %c0_i32, %c0_i32_0 : i32, i32, i32
  }
}

</mosaic_0001>

<llo_original>
// kernel: dice_cross_entropy.1
$region0: #{dice_cross_entropy.1}
  #allocation0 [shape = 'u32[]', space=smem, size = 0x4, offset = 0x4, fixed_abs, tag = 'smem constant byte address 0x4 - core index']
  #allocation1 [shape = 'u32[72,128]{1,0:T(1,128)}', space=vmem, size = 0x9000, scoped, tag = 'internal scratch']
  %s0 = inlined_call_operand.vmem [shape: f32[2,4,256], index: 0, kind: input, shape index: {}]
  %s1 = inlined_call_operand.vmem [shape: f32[2,4,256], index: 1, kind: input, shape index: {}]
  %s2 = inlined_call_operand.vmem [shape: f32[2,4,256], index: 2, kind: output, shape index: {}]
  %s3 = sld [smem:[#allocation0]]
  $region45: #{dice_cross_entropy.1} parent=0
    _
  %s5 = ssub.s32 1, %s3
  %s6 = scalar_select 0, %s5, %s3
  loop: start=0, step=1, limit=4
  $region2: #{dice_cross_entropy.1} parent=0 // loop_pre_header
    _
  $region3: #{dice_cross_entropy.1} parent=0 // loop_header
    %s8 = sphi 0, %s12
    %p9 = scmp.ge.s32.totalorder %s8, 4
    %s15 = sphi 0, %s27
    %s16 = sphi 0, %s23
    %s17 = sphi 0, %s15
    %s18 = sphi 0, %s16
    %s19 = sphi 0, %s17
    %s20 = sphi 0, %s18
    %s32 = sphi 0, %s34
    %s35 = sphi 0, %s32
    %s36 = sphi 0, %s35
    %s52 = sphi 0, %s36
    %s60 = sphi 0, %s62
    %s63 = sphi 0, %s60
    %s64 = sphi 0, %s63
    %s80 = sphi 0, %s64
    %s86 = sphi 0, %s88
    %s89 = sphi 0, %s86
    %s90 = sphi 0, %s89
    %s106 = sphi 0, %s90
  $region4: #{dice_cross_entropy.1} parent=0 // loop_header_branch
    %11 = sbr.rel (%p9) target = $region8
  $region5: #{dice_cross_entropy.1} parent=0 // loop_body
    %s13 = ssub.s32 %s8, 1
    %s14 = ssub.s32 %s8, 2
    %s21 = sadd.s32 1, %s16
    %p22 = scmp.ge.s32.totalorder %s21, 1
    %s23 = scalar_select %p22, 0, %s21
    %s24 = sadd.s32 1, %s15
    %s25 = scalar_select %p22, %s24, %s15
    %p26 = scmp.ge.s32.totalorder %s25, 2
    %s27 = scalar_select %p26, 0, %s25
    %s28 = ssub.s32 %s15, %s27
    %s29 = ssub.s32 %s16, %s23
    %s30 = sor.u32 %s28, %s29
    %p31 = scmp.eq.s32.totalorder %s30, 0
    %s33 = sadd.s32 %s32, 1
    %s34 = scalar_select %p31, %s32, %s33
    %p37 = pneg %p31
    %p38 = scmp.eq.s32.totalorder %s8, 1
    %p39 = por %p37, %p38
    %p40 = scmp.ne.s32.totalorder %s32, %s35
    %p41 = scmp.eq.s32.totalorder %s8, 0
    %p42 = por %p40, %p41
    %p43 = scmp.ne.s32.totalorder %s32, %s35
    %p44 = scmp.eq.s32.totalorder %s13, 1
    %p45 = por %p43, %p44
    %p46 = scmp.ne.s32.totalorder %s35, %s36
    %p47 = scmp.eq.s32.totalorder %s13, 0
    %p48 = por %p46, %p47
    %p49 = scmp.ne.s32.totalorder %s35, %s36
    %p50 = scmp.eq.s32.totalorder %s14, 1
    %p51 = por %p49, %p50
    %p53 = scmp.ne.s32.totalorder %s36, %s52
    %p54 = scmp.eq.s32.totalorder %s14, 0
    %p55 = por %p53, %p54
    %s56 = ssub.s32 %s15, %s27
    %s57 = ssub.s32 %s16, %s23
    %s58 = sor.u32 %s56, %s57
    %p59 = scmp.eq.s32.totalorder %s58, 0
    %s61 = sadd.s32 %s60, 1
    %s62 = scalar_select %p59, %s60, %s61
    %p65 = pneg %p59
    %p66 = scmp.eq.s32.totalorder %s8, 1
    %p67 = por %p65, %p66
    %p68 = scmp.ne.s32.totalorder %s60, %s63
    %p69 = scmp.eq.s32.totalorder %s8, 0
    %p70 = por %p68, %p69
    %p71 = scmp.ne.s32.totalorder %s60, %s63
    %p72 = scmp.eq.s32.totalorder %s13, 1
    %p73 = por %p71, %p72
    %p74 = scmp.ne.s32.totalorder %s63, %s64
    %p75 = scmp.eq.s32.totalorder %s13, 0
    %p76 = por %p74, %p75
    %p77 = scmp.ne.s32.totalorder %s63, %s64
    %p78 = scmp.eq.s32.totalorder %s14, 1
    %p79 = por %p77, %p78
    %p81 = scmp.ne.s32.totalorder %s64, %s80
    %p82 = scmp.eq.s32.totalorder %s14, 0
    %p83 = por %p81, %p82
    %s84 = ssub.s32 %s15, %s27
    %p85 = scmp.eq.s32.totalorder %s84, 0
    %s87 = sadd.s32 %s86, 1
    %s88 = scalar_select %p85, %s86, %s87
    %p91 = pneg %p85
    %p92 = scmp.eq.s32.totalorder %s8, 1
    %p93 = por %p91, %p92
    %p94 = scmp.ne.s32.totalorder %s86, %s89
    %p95 = scmp.eq.s32.totalorder %s8, 0
    %p96 = por %p94, %p95
    %p97 = scmp.ne.s32.totalorder %s86, %s89
    %p98 = scmp.eq.s32.totalorder %s13, 1
    %p99 = por %p97, %p98
    %p100 = scmp.ne.s32.totalorder %s89, %s90
    %p101 = scmp.eq.s32.totalorder %s13, 0
    %p102 = por %p100, %p101
    %p103 = scmp.ne.s32.totalorder %s89, %s90
    %p104 = scmp.eq.s32.totalorder %s14, 1
    %p105 = por %p103, %p104
    %p107 = scmp.ne.s32.totalorder %s90, %s106
    %p108 = scmp.eq.s32.totalorder %s14, 0
    %p109 = por %p107, %p108
    %p110 = scmp.le.s32.totalorder 1, %s8
    %p111 = scmp.lt.s32.totalorder %s8, 3
    %p112 = pnand %p110, %p111
    %p113 = pneg %p112
    // Predicated region
    $region9: #{dice_cross_entropy.1} parent=5 // pred_check
      _
    $region10: #{dice_cross_entropy.1} parent=5 // pred_check_branch
      %115 = sbr.rel (%p112) target = $region12
    $region11: #{dice_cross_entropy.1} parent=5 // pred_region
      %s116 = ssub.s32 %s8, 1
    $region12: #{dice_cross_entropy.1} parent=5 // pred_fallthru
      _
    %p117 = scmp.lt.s32.totalorder %s8, 2
    // Predicated region
    $region13: #{dice_cross_entropy.1} parent=5 // pred_check
      %p118 = pneg %p117
    $region14: #{dice_cross_entropy.1} parent=5 // pred_check_branch
      %120 = sbr.rel (%p118) target = $region16
    $region15: #{dice_cross_entropy.1} parent=5 // pred_region
      // Predicated region
      $region17: #{dice_cross_entropy.1} parent=15 // pred_check
        %p121 = pneg %p42
      $region18: #{dice_cross_entropy.1} parent=15 // pred_check_branch
        %123 = sbr.rel (%p121) target = $region20
      $region19: #{dice_cross_entropy.1} parent=15 // pred_region
        %s124 = smul.u32 2, %s16
        %p125 = scmp.lt.s32.totalorder %s15, 1
        %s126 = scalar_select %p125, %s15, 1
        %p127 = scmp.lt.s32.totalorder %s124, 1
        %s128 = scalar_select %p127, %s124, 1
        %s129 = smul.addr %s126, 2
        %s130 = sadd.s32 %s128, %s129
        %s131 = smul.addr %s130, 4
        %s132 = scalar_lea.vmem %s0, %s131
        %s133 = smul.u32 2, %s16
      $region20: #{dice_cross_entropy.1} parent=15 // pred_fallthru
        _
      // Predicated region
      $region21: #{dice_cross_entropy.1} parent=15 // pred_check
        %p134 = pneg %p70
      $region22: #{dice_cross_entropy.1} parent=15 // pred_check_branch
        %136 = sbr.rel (%p134) target = $region24
      $region23: #{dice_cross_entropy.1} parent=15 // pred_region
        %s137 = smul.u32 2, %s16
        %p138 = scmp.lt.s32.totalorder %s15, 1
        %s139 = scalar_select %p138, %s15, 1
        %p140 = scmp.lt.s32.totalorder %s137, 1
        %s141 = scalar_select %p140, %s137, 1
        %s142 = smul.addr %s139, 2
        %s143 = sadd.s32 %s141, %s142
        %s144 = smul.addr %s143, 4
        %s145 = scalar_lea.vmem %s1, %s144
        %s146 = smul.u32 2, %s16
      $region24: #{dice_cross_entropy.1} parent=15 // pred_fallthru
        _
    $region16: #{dice_cross_entropy.1} parent=5 // pred_fallthru
      _
    %p147 = scmp.le.s32.totalorder 1, %s8
    %p148 = scmp.lt.s32.totalorder %s8, 3
    %p149 = pnand %p147, %p148
    %p150 = pneg %p149
    // Predicated region
    $region25: #{dice_cross_entropy.1} parent=5 // pred_check
      _
    $region26: #{dice_cross_entropy.1} parent=5 // pred_check_branch
      %152 = sbr.rel (%p149) target = $region28
    $region27: #{dice_cross_entropy.1} parent=5 // pred_region
      %s153 = ssub.s32 %s8, 1
      %s154 = smul.u32 2, %s18
      %p155 = scmp.lt.s32.totalorder %s17, 1
      %s156 = scalar_select %p155, %s17, 1
      %p157 = scmp.lt.s32.totalorder %s154, 1
      %s158 = scalar_select %p157, %s154, 1
      %s159 = smul.addr %s156, 2
      %s160 = sadd.s32 %s158, %s159
      %s161 = smul.addr %s160, 4
      %s162 = scalar_lea.vmem %s0, %s161
      %p163 = pneg %p48
      %p164 = pneg %p45
      %s165 = smul.u32 2, %s18
      %p166 = scmp.lt.s32.totalorder %s17, 1
      %s167 = scalar_select %p166, %s17, 1
      %p168 = scmp.lt.s32.totalorder %s165, 1
      %s169 = scalar_select %p168, %s165, 1
      %s170 = smul.addr %s167, 2
      %s171 = sadd.s32 %s169, %s170
      %s172 = smul.addr %s171, 4
      %s173 = scalar_lea.vmem %s1, %s172
      %p174 = pneg %p76
      %p175 = pneg %p73
      %p176 = pneg %p102
      %p177 = pneg %p99
      %p178 = scmp.lt.s32.totalorder %s17, 1
      %s179 = scalar_select %p178, %s17, 1
      %s180 = smul.addr %s179, 2
      %s181 = smul.addr %s180, 4
      %s182 = scalar_lea.vmem %s2, %s181
      %s183 = smul.u32 2, %s18
      %p184 = scmp.lt.s32.totalorder %s17, 1
      %s185 = scalar_select %p184, %s17, 1
      %p186 = scmp.lt.s32.totalorder %s183, 1
      %s187 = scalar_select %p186, %s183, 1
      %s188 = smul.addr %s185, 2
      %s189 = sadd.s32 %s187, %s188
      %s190 = smul.addr %s189, 4
      %s191 = scalar_lea.vmem %s0, %s190
      %s192 = smul.u32 2, %s18
      %s193 = smul.u32 2, %s18
      %p194 = scmp.lt.s32.totalorder %s17, 1
      %s195 = scalar_select %p194, %s17, 1
      %p196 = scmp.lt.s32.totalorder %s193, 1
      %s197 = scalar_select %p196, %s193, 1
      %s198 = smul.addr %s195, 2
      %s199 = sadd.s32 %s197, %s198
      %s200 = smul.addr %s199, 4
      %s201 = scalar_lea.vmem %s1, %s200
      %s202 = smul.u32 2, %s18
      %p203 = scmp.lt.s32.totalorder %s17, 1
      %s204 = scalar_select %p203, %s17, 1
      %s205 = smul.addr %s204, 2
      %s206 = smul.addr %s205, 4
      %s207 = scalar_lea.vmem %s2, %s206
      %p208 = scmp.eq.s32.totalorder %s18, 0
      // Predicated region
      $region29: #{dice_cross_entropy.1} parent=27 // pred_check
        %p209 = pneg %p208
      $region30: #{dice_cross_entropy.1} parent=27 // pred_check_branch
        %211 = sbr.rel (%p209) target = $region32
      $region31: #{dice_cross_entropy.1} parent=27 // pred_region
        %212 = vst [vmem:[%s207] sm:$0xff] 0.0
      $region32: #{dice_cross_entropy.1} parent=27 // pred_fallthru
        _
      %v213 = vld [vmem:[%s191] sm:$0xff]
      %v214 = vld [vmem:[%s201] sm:$0xff]
      %v215 = vxor.u32 %v213, 2147483648
      %v216 = vmul.f32 %v215, 1.442695
      %v217 = vpow.pop %v216
      %v218 = vadd.f32 %v217, 1.0
      %v219 = vrcp.pop %v218
      %v220 = vmul.f32 %v218, %v219
      %v221 = vsub.f32 1.0, %v220
      %v222 = vmul.f32 %v219, %v221
      %v223 = vadd.f32 %v219, %v222
      %vm224 = vweird.f32 %v218
      %vm225 = vweird.f32 %v219
      %vm226 = vmor %vm224, %vm225
      %v227 = vsel %vm226, %v219, %v223
      %v228 = vand.u32 2147483647, %v218
      %vm229 = vcmp.eq.f32.partialorder %v228, 8.507059e+37
      %v230 = vand.u32 %v218, 2147483648
      %v231 = vor.u32 1.1754944e-38, %v230
      %v232 = vsel %vm229, %v231, %v227
      %v233 = vmul.f32 1.0, %v232
      %v234 = vxor.u32 %v214, 2147483648
      %v235 = vmul.f32 %v234, 1.442695
      %v236 = vpow.pop %v235
      %v237 = vadd.f32 %v236, 1.0
      %v238 = vrcp.pop %v237
      %v239 = vmul.f32 %v237, %v238
      %v240 = vsub.f32 1.0, %v239
      %v241 = vmul.f32 %v238, %v240
      %v242 = vadd.f32 %v238, %v241
      %vm243 = vweird.f32 %v237
      %vm244 = vweird.f32 %v238
      %vm245 = vmor %vm243, %vm244
      %v246 = vsel %vm245, %v238, %v242
      %v247 = vand.u32 2147483647, %v237
      %vm248 = vcmp.eq.f32.partialorder %v247, 8.507059e+37
      %v249 = vand.u32 %v237, 2147483648
      %v250 = vor.u32 1.1754944e-38, %v249
      %v251 = vsel %vm248, %v250, %v246
      %v252 = vmul.f32 1.0, %v251
      %254 = vst [vmem:[#allocation1] ss:$2 sm:$0xff] %v233
      %v255 = vld.sshfl [vmem:[#allocation1] sm:$0xff pattern:$0x75316420]
      %v256 = vld.sshfl [vmem:[#allocation1 + $0x8] sm:$0xff pattern:$0x75316420]
      %vm259 = vcmask 1043456
      %v260 = vsel %vm259, %v255, 0.0
      %v261 = vrot.slane %v260, 4
      %v262 = vadd.f32 %v260, %v261
      %v263 = vrot.slane %v262, 2
      %v264 = vadd.f32 %v262, %v263
      %v265 = vrot.slane %v264, 1
      %v266 = vadd.f32 %v264, %v265
      %v267 = vsel %vm259, %v256, 0.0
      %v268 = vrot.slane %v267, 4
      %v269 = vadd.f32 %v267, %v268
      %v270 = vrot.slane %v269, 2
      %v271 = vadd.f32 %v269, %v270
      %v272 = vrot.slane %v271, 1
      %v273 = vadd.f32 %v271, %v272
      %275 = vst [vmem:[#allocation1] ss:$2 sm:$0xff] %v252
      %v276 = vld.sshfl [vmem:[#allocation1] sm:$0xff pattern:$0x75316420]
      %v277 = vld.sshfl [vmem:[#allocation1 + $0x8] sm:$0xff pattern:$0x75316420]
      %v280 = vsel %vm259, %v276, 0.0
      %v281 = vrot.slane %v280, 4
      %v282 = vadd.f32 %v280, %v281
      %v283 = vrot.slane %v282, 2
      %v284 = vadd.f32 %v282, %v283
      %v285 = vrot.slane %v284, 1
      %v286 = vadd.f32 %v284, %v285
      %v287 = vsel %vm259, %v277, 0.0
      %v288 = vrot.slane %v287, 4
      %v289 = vadd.f32 %v287, %v288
      %v290 = vrot.slane %v289, 2
      %v291 = vadd.f32 %v289, %v290
      %v292 = vrot.slane %v291, 1
      %v293 = vadd.f32 %v291, %v292
      %v294 = vmul.f32 %v233, %v252
      %296 = vst [vmem:[#allocation1] ss:$2 sm:$0xff] %v294
      %v297 = vld.sshfl [vmem:[#allocation1] sm:$0xff pattern:$0x75316420]
      %v298 = vld.sshfl [vmem:[#allocation1 + $0x8] sm:$0xff pattern:$0x75316420]
      %v301 = vsel %vm259, %v297, 0.0
      %v302 = vrot.slane %v301, 4
      %v303 = vadd.f32 %v301, %v302
      %v304 = vrot.slane %v303, 2
      %v305 = vadd.f32 %v303, %v304
      %v306 = vrot.slane %v305, 1
      %v307 = vadd.f32 %v305, %v306
      %v308 = vsel %vm259, %v298, 0.0
      %v309 = vrot.slane %v308, 4
      %v310 = vadd.f32 %v308, %v309
      %v311 = vrot.slane %v310, 2
      %v312 = vadd.f32 %v310, %v311
      %v313 = vrot.slane %v312, 1
      %v314 = vadd.f32 %v312, %v313
      %v315 = vmul.f32 %v233, 1.442695
      %v316 = vpow.pop %v315
      %318 = vst [vmem:[#allocation1] ss:$2 sm:$0xff] %v316
      %v319 = vld.sshfl [vmem:[#allocation1] sm:$0xff pattern:$0x75316420]
      %v320 = vld.sshfl [vmem:[#allocation1 + $0x8] sm:$0xff pattern:$0x75316420]
      %v323 = vsel %vm259, %v319, 0.0
      %v324 = vrot.slane %v323, 4
      %v325 = vadd.f32 %v323, %v324
      %v326 = vrot.slane %v325, 2
      %v327 = vadd.f32 %v325, %v326
      %v328 = vrot.slane %v327, 1
      %v329 = vadd.f32 %v327, %v328
      %v330 = vsel %vm259, %v320, 0.0
      %v331 = vrot.slane %v330, 4
      %v332 = vadd.f32 %v330, %v331
      %v333 = vrot.slane %v332, 2
      %v334 = vadd.f32 %v332, %v333
      %v335 = vrot.slane %v334, 1
      %v336 = vadd.f32 %v334, %v335
      %v337 = vlog2.pop %v329
      %v338 = vmul.f32 %v337, 0.6931472
      %v339 = vlog2.pop %v336
      %v340 = vmul.f32 %v339, 0.6931472
      %v341 = vmul.f32 %v338, %v286
      %v342 = vmul.f32 %v340, %v293
      %v343 = vld [vmem:[%s207] sm:$0xff]
      %vm344 = vcmask 1040384
      %v345 = vsel %vm344, %v266, %v286
      %v346 = vsel %vm344, %v273, %v293
      %vm347 = vcmask 1041408
      %v348 = vsel %vm347, %v345, %v307
      %v349 = vsel %vm347, %v346, %v314
      %vm350 = vcmask 1042432
      %v351 = vsel %vm350, %v348, %v341
      %v352 = vsel %vm350, %v349, %v342
      %v355 = vrot.slane %v352, 4
      %v356 = vsel %vm259, %v351, %v355
      %v358 = vadd.f32 %v343, %v356
      %359 = vst [vmem:[%s207] sm:$0xff] %v358
      %p360 = scmp.lt.s32.totalorder %s17, 1
      %s361 = scalar_select %p360, %s17, 1
      %s362 = smul.addr %s361, 2
      %s363 = smul.addr %s362, 4
      %s364 = scalar_lea.vmem %s2, %s363
      // Predicated region
      $region33: #{dice_cross_entropy.1} parent=27 // pred_check
        %p365 = pneg %p99
      $region34: #{dice_cross_entropy.1} parent=27 // pred_check_branch
        %367 = sbr.rel (%p365) target = $region36
      $region35: #{dice_cross_entropy.1} parent=27 // pred_region
        _
      $region36: #{dice_cross_entropy.1} parent=27 // pred_fallthru
        _
    $region28: #{dice_cross_entropy.1} parent=5 // pred_fallthru
      _
    %p368 = scmp.le.s32.totalorder 2, %s8
    // Predicated region
    $region37: #{dice_cross_entropy.1} parent=5 // pred_check
      %p369 = pneg %p368
    $region38: #{dice_cross_entropy.1} parent=5 // pred_check_branch
      %371 = sbr.rel (%p369) target = $region40
    $region39: #{dice_cross_entropy.1} parent=5 // pred_region
      %s372 = ssub.s32 %s8, 2
      // Predicated region
      $region41: #{dice_cross_entropy.1} parent=39 // pred_check
        %p373 = pneg %p105
      $region42: #{dice_cross_entropy.1} parent=39 // pred_check_branch
        %375 = sbr.rel (%p373) target = $region44
      $region43: #{dice_cross_entropy.1} parent=39 // pred_region
        %p376 = scmp.lt.s32.totalorder %s19, 1
        %s377 = scalar_select %p376, %s19, 1
        %s378 = smul.addr %s377, 2
        %s379 = smul.addr %s378, 4
        %s380 = scalar_lea.vmem %s2, %s379
      $region44: #{dice_cross_entropy.1} parent=39 // pred_fallthru
        _
    $region40: #{dice_cross_entropy.1} parent=5 // pred_fallthru
      _
  $region6: #{dice_cross_entropy.1} parent=0 // loop_footer
    %s12 = sadd.s32 1, %s8
  $region7: #{dice_cross_entropy.1} parent=0 // loop_footer_branch
    %7 = sbr.rel target = $region3
  $region8: #{dice_cross_entropy.1} parent=0 // loop_exit
    _

</llo_original>
